<compile_context>
chip_gen: v7x
topology: tpu7x:2x2x1
jax: 0.10.0
libtpu: 0.0.40
codegen_flags: <defaults>
</compile_context>

<pallas_src>
import math

import jax
import jax.numpy as jnp
from jax.experimental import pallas as pl
from jax.experimental.pallas import tpu as pltpu

# Conv2d_ien defaults: m=4, kernel_size=3, stride=1, padding=0, dilation=1, groups=1
M = 4
KH = KW = 3
STRIDE = 1
PADDING = 0  # TODO(synk): only the module's default config (stride=1, padding=0, dilation=1, groups=1, domms=True) is implemented.


def _round_up(x, m):
    return ((x + m - 1) // m) * m


def _pick_row_tile(p, n_batch, max_tile=512, min_steps=8):
    """Largest multiple-of-128 tile (<= max_tile) that still yields >= min_steps grid steps."""
    cap = max(128, min(max_tile, _round_up(p, 128)))
    best = 128
    for tp in range(128, cap + 1, 128):
        if n_batch * ((p + tp - 1) // tp) >= min_steps:
            best = tp
    return best


def _make_kernel(cout_pad, row_tile):
    """Kernel factory (closes over static shape constants)."""

    def kernel(x_ref, w_ref, b_ref, o_ref):
        # x_ref: (1, Kpad, TP)      bf16 im2col tile (patch dim on sublanes, spatial on lanes)
        # w_ref: (cout_pad, Kpad)   bf16 folded ensemble weight (grid-resident)
        # b_ref: (cout_pad, 1)      f32  folded ensemble bias   (grid-resident)
        # o_ref: (1, cout_pad, TP)  output tile: channels on sublanes, spatial lane-dense
        acc = jnp.dot(w_ref[...], x_ref[0],
                      preferred_element_type=jnp.float32)        # (cout_pad, TP) f32
        o_ref[0] = (acc + b_ref[...]).astype(o_ref.dtype)

    return kernel


def conv2d_ien_forward(x_nchw, weights, biases, minv, *, max_rows_per_tile=512):
    """weights: (M, Cout, Cin, KH, KW) (PyTorch layout); biases: (M, Cout); minv: (M,)."""
    N, Cin, H, W = x_nchw.shape
    Cout = weights.shape[1]
    OH = (H + 2 * PADDING - KH) // STRIDE + 1
    OW = (W + 2 * PADDING - KW) // STRIDE + 1
    P = OH * OW                                    # output spatial positions (lane dim)
    K = KH * KW * Cin                              # merged-tap contraction dim

    TP = _pick_row_tile(P, N, max_tile=max_rows_per_tile)
    P_pad = _round_up(P, TP)                       # aligned tiles, never a giant fallback tile
    KPAD = _round_up(K, 16)                        # bf16 sublane packing
    CPAD = _round_up(Cout, 8)                      # sublane-aligned output channels (no 128 pad)

    # ---- fold the linear ensemble exactly: one conv instead of M -------------
    w_comb = jnp.tensordot(minv, weights, axes=1)                  # (Cout, Cin, KH, KW)
    b_comb = jnp.tensordot(minv, biases, axes=1)                   # (Cout,)
    # (Cout,Cin,KH,KW) -> (Cout,KH,KW,Cin) -> (Cout, K); K index = (kh*KW + kw)*Cin + c
    w_mat = jnp.transpose(w_comb, (0, 2, 3, 1)).reshape(Cout, K)
    w_mat = jnp.pad(w_mat, ((0, CPAD - Cout), (0, KPAD - K))).astype(jnp.bfloat16)
    b_col = jnp.pad(b_comb, (0, CPAD - Cout)).reshape(CPAD, 1).astype(jnp.float32)

    # ---- lane-dense im2col: (N, K, P), spatial positions on lanes -------------
    taps = []
    for kh in range(KH):
        for kw in range(KW):
            taps.append(x_nchw[:, :, kh:kh + OH, kw:kw + OW].reshape(N, Cin, P))
    x_col = jnp.stack(taps, axis=1).reshape(N, K, P)               # index = tap*Cin + c
    x_col = jnp.pad(x_col, ((0, 0), (0, KPAD - K), (0, P_pad - P))).astype(jnp.bfloat16)

    n_tiles = P_pad // TP
    cost = pl.CostEstimate(
        flops=2 * N * P_pad * CPAD * KPAD,
        transcendentals=0,
        bytes_accessed=int(x_col.size) * 2 + int(w_mat.size) * 2 + int(b_col.size) * 4
        + N * CPAD * P_pad * x_nchw.dtype.itemsize)

    try:  # generation-aware VMEM budget (v7x only has 64 MiB physical)
        vmem_cap = pltpu.get_tpu_info().vmem_capacity_bytes
        vmem_limit = int(min(vmem_cap // 2, 64 * 1024 * 1024))
    except Exception:
        vmem_limit = 32 * 1024 * 1024

    out = pl.pallas_call(
        _make_kernel(CPAD, TP),
        out_shape=jax.ShapeDtypeStruct((N, CPAD, P_pad), x_nchw.dtype),
        grid=(N, n_tiles),
        in_specs=[
            pl.BlockSpec((1, KPAD, TP), lambda n, t: (n, 0, t)),   # im2col tile (bf16)
            pl.BlockSpec((CPAD, KPAD), lambda n, t: (0, 0)),       # folded weights (bf16, resident)
            pl.BlockSpec((CPAD, 1), lambda n, t: (0, 0)),          # folded bias (f32, resident)
        ],
        out_specs=pl.BlockSpec((1, CPAD, TP), lambda n, t: (n, 0, t)),
        compiler_params=pltpu.CompilerParams(
            dimension_semantics=("parallel", "parallel"),
            vmem_limit_bytes=vmem_limit),
        cost_estimate=cost,
    )(x_col, w_mat, b_col)

    # (N, CPAD, P_pad): channels already lead -> NCHW epilogue is just slice + reshape.
    return out[:, :Cout, :P].reshape(N, Cout, OH, OW)


# ------------------------------ references -----------------------------------
def conv2d_ien_reference(x_nchw, weights, biases, minv):
    """Exact float32 reference matching the PyTorch forward (sum of m scaled convs)."""
    acc = None
    for mi in range(weights.shape[0]):
        y = jax.lax.conv_general_dilated(
            x_nchw, weights[mi], window_strides=(STRIDE, STRIDE), padding="VALID",
            dimension_numbers=("NCHW", "OIHW", "NCHW"),
            precision=jax.lax.Precision.HIGHEST)
        y = y + biases[mi][None, :, None, None]
        term = minv[mi] * y
        acc = term if acc is None else acc + term
    return acc


def conv2d_ien_reference_bf16_inputs(x_nchw, weights, biases, minv):
    """Folded forward with conv operands rounded to bf16 (exactly what the kernel's MXU sees)."""
    w_comb = jnp.tensordot(minv, weights, axes=1)
    b_comb = jnp.tensordot(minv, biases, axes=1)
    xr = x_nchw.astype(jnp.bfloat16).astype(jnp.float32)
    wr = w_comb.astype(jnp.bfloat16).astype(jnp.float32)
    y = jax.lax.conv_general_dilated(
        xr, wr, window_strides=(STRIDE, STRIDE), padding="VALID",
        dimension_numbers=("NCHW", "OIHW", "NCHW"),
        precision=jax.lax.Precision.HIGHEST)
    return y + b_comb[None, :, None, None]


if __name__ == "__main__":
    key = jax.random.PRNGKey(0)
    N, Cin, Cout, H, W = 2, 4, 8, 16, 16
    kx, kwt, kb = jax.random.split(key, 3)

    # ien_normal_: std = gain * sqrt(m) / sqrt(fan_in), gain = sqrt(2) for relu.
    fan_in = Cin * KH * KW
    std = math.sqrt(2.0) * math.sqrt(M) / math.sqrt(fan_in)
    weights = std * jax.random.normal(kwt, (M, Cout, Cin, KH, KW), jnp.float32)
    # nn.Conv2d default bias init: U(-1/sqrt(fan_in), 1/sqrt(fan_in))
    bound = 1.0 / math.sqrt(fan_in)
    biases = jax.random.uniform(kb, (M, Cout), jnp.float32, minval=-bound, maxval=bound)
    # minv[i] = 1/m (non-trainable)
    minv = jnp.full((M,), 1.0 / M, dtype=jnp.float32)

    x = jax.random.normal(kx, (N, Cin, H, W), dtype=jnp.float32)

    fwd = jax.jit(conv2d_ien_forward)
    out = jax.block_until_ready(fwd(x, weights, biases, minv))

    OH, OW = H - KH + 1, W - KW + 1
    assert out.shape == (N, Cout, OH, OW), out.shape

    # Tight check: same bf16-rounded operands, f32 accumulation -> only summation-order noise.
    ref_bf16 = conv2d_ien_reference_bf16_inputs(x, weights, biases, minv)
    assert jnp.allclose(out, ref_bf16, atol=2e-3, rtol=2e-3), float(jnp.max(jnp.abs(out - ref_bf16)))

    # Loose sanity check vs. the exact float32 module forward (only bf16 operand rounding differs).
    ref_f32 = conv2d_ien_reference(x, weights, biases, minv)
    assert jnp.allclose(out, ref_f32, atol=1e-1, rtol=1e-1), float(jnp.max(jnp.abs(out - ref_f32)))

    print("KERNEL_OK")
</pallas_src>

<mosaic_0001>
module attributes {stable_mosaic.version = 11 : i64} {
  func.func @kernel(%arg0: i32, %arg1: i32, %arg2: memref<1x48x128xbf16, #tpu.memory_space<vmem>>, %arg3: memref<8x48xbf16, #tpu.memory_space<vmem>>, %arg4: memref<8x1xf32, #tpu.memory_space<vmem>>, %arg5: memref<1x8x128xf32, #tpu.memory_space<vmem>>) attributes {dimension_semantics = [#tpu.dimension_semantics<parallel>, #tpu.dimension_semantics<parallel>], iteration_bounds = array<i64: 2, 2>, scalar_prefetch = 0 : i64, scratch_operands = 0 : i64, tpu.core_type = #tpu.core_type<tc>, window_params = [{transform_indices = @transform_0, window_bounds = array<i64: 1, 48, 128>}, {pipeline_mode = #tpu.pipeline_mode<synchronous>, transform_indices = @transform_1, window_bounds = array<i64: 8, 48>}, {pipeline_mode = #tpu.pipeline_mode<synchronous>, transform_indices = @transform_2, window_bounds = array<i64: 8, 1>}, {transform_indices = @transform_3, window_bounds = array<i64: 1, 8, 128>}]} {
    %c0 = arith.constant 0 : index
    %c0_0 = arith.constant 0 : index
    %0 = vector.load %arg3[%c0, %c0_0] : memref<8x48xbf16, #tpu.memory_space<vmem>>, vector<8x48xbf16>
    %c0_1 = arith.constant 0 : index
    %c0_2 = arith.constant 0 : index
    %c0_3 = arith.constant 0 : index
    %1 = vector.load %arg2[%c0_1, %c0_2, %c0_3] : memref<1x48x128xbf16, #tpu.memory_space<vmem>>, vector<1x48x128xbf16>
    %2 = vector.shape_cast %1 : vector<1x48x128xbf16> to vector<48x128xbf16>
    %cst = arith.constant dense<0.000000e+00> : vector<8x128xf32>
    %3 = tpu.matmul %0, %2, %cst {dimension_numbers = #tpu.dot_dimension_numbers<[1], [0], [0], [1], [0, 0, 1, 1], [], []>} : vector<8x48xbf16>, vector<48x128xbf16>, vector<8x128xf32> -> vector<8x128xf32>
    %c0_4 = arith.constant 0 : index
    %c0_5 = arith.constant 0 : index
    %4 = vector.load %arg4[%c0_4, %c0_5] : memref<8x1xf32, #tpu.memory_space<vmem>>, vector<8x1xf32>
    %5 = vector.broadcast %4 : vector<8x1xf32> to vector<8x128xf32>
    %6 = arith.addf %3, %5 : vector<8x128xf32>
    %c0_6 = arith.constant 0 : index
    %c0_7 = arith.constant 0 : index
    %c0_8 = arith.constant 0 : index
    %7 = vector.load %arg5[%c0_6, %c0_7, %c0_8] : memref<1x8x128xf32, #tpu.memory_space<vmem>>, vector<1x8x128xf32>
    %8 = vector.shape_cast %7 : vector<1x8x128xf32> to vector<8x128xf32>
    %9 = vector.shape_cast %6 : vector<8x128xf32> to vector<1x8x128xf32>
    tpu.vector_store %arg5[%c0_6, %c0_7, %c0_8], %9 {strides = array<i32>} : memref<1x8x128xf32, #tpu.memory_space<vmem>>, vector<1x8x128xf32>,
    return
  }
  func.func @transform_0(%arg0: i32, %arg1: i32) -> (i32, i32, i32) {
    %c0_i32 = arith.constant 0 : i32
    %c0_i32_0 = arith.constant 0 : i32
    return %arg0, %c0_i32, %arg1 : i32, i32, i32
  }
  func.func @transform_1(%arg0: i32, %arg1: i32) -> (i32, i32) {
    %c0_i32 = arith.constant 0 : i32
    %c0_i32_0 = arith.constant 0 : i32
    %c0_i32_1 = arith.constant 0 : i32
    return %c0_i32, %c0_i32_0 : i32, i32
  }
  func.func @transform_2(%arg0: i32, %arg1: i32) -> (i32, i32) {
    %c0_i32 = arith.constant 0 : i32
    %c0_i32_0 = arith.constant 0 : i32
    %c0_i32_1 = arith.constant 0 : i32
    return %c0_i32, %c0_i32_0 : i32, i32
  }
  func.func @transform_3(%arg0: i32, %arg1: i32) -> (i32, i32, i32) {
    %c0_i32 = arith.constant 0 : i32
    %c0_i32_0 = arith.constant 0 : i32
    return %arg0, %c0_i32, %arg1 : i32, i32, i32
  }
}

</mosaic_0001>

<llo_original>
// kernel: conv2d_ien_forward.1
$region0: #{conv2d_ien_forward.1}
  #allocation0 [shape = 'u32[]', space=smem, size = 0x4, offset = 0x4, fixed_abs, tag = 'smem constant byte address 0x4 - core index']
  #allocation1 [shape = 'u32[144,128]{1,0:T(1,128)}', space=vmem, size = 0x12000, scoped, tag = 'internal scratch']
  %s0 = inlined_call_operand.vmem [shape: bf16[2,48,256], index: 0, kind: input, shape index: {}]
  %s1 = inlined_call_operand.vmem [shape: bf16[8,48], index: 1, kind: input, shape index: {}]
  %s2 = inlined_call_operand.vmem [shape: f32[8,1], index: 2, kind: input, shape index: {}]
  %s3 = inlined_call_operand.vmem [shape: f32[2,8,256], index: 3, kind: output, shape index: {}]
  %s4 = sld [smem:[#allocation0]]
  $region86: #{conv2d_ien_forward.1} parent=0
    _
  %s6 = ssub.s32 1, %s4
  %s7 = scalar_select 0, %s6, %s4
  $region1: #{conv2d_ien_forward.1} parent=0
    #allocation2 [shape = 'u8[24576]{0}', space=vmem, size = 0x6000, scoped, tag = 'input window, operand 0']
    loop: start=0, step=1, limit=6
    $region2: #{conv2d_ien_forward.1} parent=1 // loop_pre_header
      _
    $region3: #{conv2d_ien_forward.1} parent=1 // loop_header
      %s9 = sphi 0, %s13
      %p10 = scmp.ge.s32.totalorder %s9, 6
      %s16 = sphi 0, %s28
      %s17 = sphi 0, %s24
      %s18 = sphi 0, %s16
      %s19 = sphi 0, %s17
      %s20 = sphi 0, %s18
      %s21 = sphi 0, %s19
      %s33 = sphi 0, %s35
      %s36 = sphi 0, %s33
      %s37 = sphi 0, %s36
      %s53 = sphi 0, %s37
      %s57 = sphi 0, %s57
      %s59 = sphi 0, %s57
      %s60 = sphi 0, %s59
      %s74 = sphi 0, %s60
      %s78 = sphi 0, %s78
      %s80 = sphi 0, %s78
      %s81 = sphi 0, %s80
      %s95 = sphi 0, %s81
      %s103 = sphi 0, %s105
      %s106 = sphi 0, %s103
      %s107 = sphi 0, %s106
      %s123 = sphi 0, %s107
    $region4: #{conv2d_ien_forward.1} parent=1 // loop_header_branch
      %12 = sbr.rel (%p10) target = $region8
    $region5: #{conv2d_ien_forward.1} parent=1 // loop_body
      %s14 = ssub.s32 %s9, 1
      %s15 = ssub.s32 %s9, 2
      %s22 = sadd.s32 1, %s17
      %p23 = scmp.ge.s32.totalorder %s22, 2
      %s24 = scalar_select %p23, 0, %s22
      %s25 = sadd.s32 1, %s16
      %s26 = scalar_select %p23, %s25, %s16
      %p27 = scmp.ge.s32.totalorder %s26, 2
      %s28 = scalar_select %p27, 0, %s26
      %s29 = ssub.s32 %s16, %s28
      %s30 = ssub.s32 %s17, %s24
      %s31 = sor.u32 %s29, %s30
      %p32 = scmp.eq.s32.totalorder %s31, 0
      %s34 = sadd.s32 %s33, 1
      %s35 = scalar_select %p32, %s33, %s34
      %p38 = pneg %p32
      %p39 = scmp.eq.s32.totalorder %s9, 3
      %p40 = por %p38, %p39
      %p41 = scmp.ne.s32.totalorder %s33, %s36
      %p42 = scmp.eq.s32.totalorder %s9, 0
      %p43 = por %p41, %p42
      %p44 = scmp.ne.s32.totalorder %s33, %s36
      %p45 = scmp.eq.s32.totalorder %s14, 3
      %p46 = por %p44, %p45
      %p47 = scmp.ne.s32.totalorder %s36, %s37
      %p48 = scmp.eq.s32.totalorder %s14, 0
      %p49 = por %p47, %p48
      %p50 = scmp.ne.s32.totalorder %s36, %s37
      %p51 = scmp.eq.s32.totalorder %s15, 3
      %p52 = por %p50, %p51
      %p54 = scmp.ne.s32.totalorder %s37, %s53
      %p55 = scmp.eq.s32.totalorder %s15, 0
      %p56 = por %p54, %p55
      %s58 = sadd.s32 %s57, 1
      %p61 = scmp.eq.s32.totalorder %s9, 3
      %p62 = scmp.ne.s32.totalorder %s57, %s59
      %p63 = scmp.eq.s32.totalorder %s9, 0
      %p64 = por %p62, %p63
      %p65 = scmp.ne.s32.totalorder %s57, %s59
      %p66 = scmp.eq.s32.totalorder %s14, 3
      %p67 = por %p65, %p66
      %p68 = scmp.ne.s32.totalorder %s59, %s60
      %p69 = scmp.eq.s32.totalorder %s14, 0
      %p70 = por %p68, %p69
      %p71 = scmp.ne.s32.totalorder %s59, %s60
      %p72 = scmp.eq.s32.totalorder %s15, 3
      %p73 = por %p71, %p72
      %p75 = scmp.ne.s32.totalorder %s60, %s74
      %p76 = scmp.eq.s32.totalorder %s15, 0
      %p77 = por %p75, %p76
      %s79 = sadd.s32 %s78, 1
      %p82 = scmp.eq.s32.totalorder %s9, 3
      %p83 = scmp.ne.s32.totalorder %s78, %s80
      %p84 = scmp.eq.s32.totalorder %s9, 0
      %p85 = por %p83, %p84
      %p86 = scmp.ne.s32.totalorder %s78, %s80
      %p87 = scmp.eq.s32.totalorder %s14, 3
      %p88 = por %p86, %p87
      %p89 = scmp.ne.s32.totalorder %s80, %s81
      %p90 = scmp.eq.s32.totalorder %s14, 0
      %p91 = por %p89, %p90
      %p92 = scmp.ne.s32.totalorder %s80, %s81
      %p93 = scmp.eq.s32.totalorder %s15, 3
      %p94 = por %p92, %p93
      %p96 = scmp.ne.s32.totalorder %s81, %s95
      %p97 = scmp.eq.s32.totalorder %s15, 0
      %p98 = por %p96, %p97
      %s99 = ssub.s32 %s16, %s28
      %s100 = ssub.s32 %s17, %s24
      %s101 = sor.u32 %s99, %s100
      %p102 = scmp.eq.s32.totalorder %s101, 0
      %s104 = sadd.s32 %s103, 1
      %s105 = scalar_select %p102, %s103, %s104
      %p108 = pneg %p102
      %p109 = scmp.eq.s32.totalorder %s9, 3
      %p110 = por %p108, %p109
      %p111 = scmp.ne.s32.totalorder %s103, %s106
      %p112 = scmp.eq.s32.totalorder %s9, 0
      %p113 = por %p111, %p112
      %p114 = scmp.ne.s32.totalorder %s103, %s106
      %p115 = scmp.eq.s32.totalorder %s14, 3
      %p116 = por %p114, %p115
      %p117 = scmp.ne.s32.totalorder %s106, %s107
      %p118 = scmp.eq.s32.totalorder %s14, 0
      %p119 = por %p117, %p118
      %p120 = scmp.ne.s32.totalorder %s106, %s107
      %p121 = scmp.eq.s32.totalorder %s15, 3
      %p122 = por %p120, %p121
      %p124 = scmp.ne.s32.totalorder %s107, %s123
      %p125 = scmp.eq.s32.totalorder %s15, 0
      %p126 = por %p124, %p125
      %p127 = scmp.le.s32.totalorder 1, %s9
      %p128 = scmp.lt.s32.totalorder %s9, 5
      %p129 = pnand %p127, %p128
      %p130 = pneg %p129
      // Predicated region
      $region9: #{conv2d_ien_forward.1} parent=5 // pred_check
        _
      $region10: #{conv2d_ien_forward.1} parent=5 // pred_check_branch
        %132 = sbr.rel (%p129) target = $region12
      $region11: #{conv2d_ien_forward.1} parent=5 // pred_region
        %s133 = ssub.s32 %s9, 1
        // Predicated region
        $region13: #{conv2d_ien_forward.1} parent=11 // pred_check
          %p134 = pneg %p70
        $region14: #{conv2d_ien_forward.1} parent=11 // pred_check_branch
          %136 = sbr.rel (%p134) target = $region16
        $region15: #{conv2d_ien_forward.1} parent=11 // pred_region
          _
        $region16: #{conv2d_ien_forward.1} parent=11 // pred_fallthru
          _
        // Predicated region
        $region17: #{conv2d_ien_forward.1} parent=11 // pred_check
          %p137 = pneg %p91
        $region18: #{conv2d_ien_forward.1} parent=11 // pred_check_branch
          %139 = sbr.rel (%p137) target = $region20
        $region19: #{conv2d_ien_forward.1} parent=11 // pred_region
          _
        $region20: #{conv2d_ien_forward.1} parent=11 // pred_fallthru
          _
      $region12: #{conv2d_ien_forward.1} parent=5 // pred_fallthru
        _
      %p140 = scmp.lt.s32.totalorder %s9, 4
      // Predicated region
      $region21: #{conv2d_ien_forward.1} parent=5 // pred_check
        %p141 = pneg %p140
      $region22: #{conv2d_ien_forward.1} parent=5 // pred_check_branch
        %143 = sbr.rel (%p141) target = $region24
      $region23: #{conv2d_ien_forward.1} parent=5 // pred_region
        // Predicated region
        $region25: #{conv2d_ien_forward.1} parent=23 // pred_check
          %p144 = pneg %p43
        $region26: #{conv2d_ien_forward.1} parent=23 // pred_check_branch
          %146 = sbr.rel (%p144) target = $region28
        $region27: #{conv2d_ien_forward.1} parent=23 // pred_region
          %s147 = sand.u32 %s33, 1
          %s148 = sand.u32 %s33, 1
          %s149 = smul.addr %s148, 24
          %s150 = scalar_lea.vmem [#allocation2], %s149
          %s151 = smul.addr %s16, 12
          %s152 = sadd.s32 %s17, %s151
          %s153 = smul.addr %s152, 4
          %s154 = scalar_lea.vmem %s0, %s153
          // Predicated region
          $region29: #{conv2d_ien_forward.1} parent=27 // pred_check
            _
          $region30: #{conv2d_ien_forward.1} parent=27 // pred_check_branch
            %156 = sbr.rel (0) target = $region32
          $region31: #{conv2d_ien_forward.1} parent=27 // pred_region
            // Predicated region
            $region33: #{conv2d_ien_forward.1} parent=31 // pred_check
              _
            $region34: #{conv2d_ien_forward.1} parent=31 // pred_check_branch
              %158 = sbr.rel target = $region36
            $region35: #{conv2d_ien_forward.1} parent=31 // pred_region
              // Predicated region
              $region48: #{conv2d_ien_forward.1} parent=35 // pred_check
                _
              $region49: #{conv2d_ien_forward.1} parent=35 // pred_check_branch
                %183 = sbr.rel (0) target = $region51
              $region50: #{conv2d_ien_forward.1} parent=35 // pred_region
                loop: start=0, step=1, limit=1
                $region52: #{conv2d_ien_forward.1} parent=50 // loop_pre_header
                  _
                $region53: #{conv2d_ien_forward.1} parent=50 // loop_header
                  %s185 = sphi 0, %s189
                  %p186 = scmp.ge.s32.totalorder %s185, 1
                  %s190 = sphi %s154, %s154
                  %s191 = sphi %s150, %s150
                $region54: #{conv2d_ien_forward.1} parent=50 // loop_header_branch
                  %188 = sbr.rel (%p186) target = $region58
                $region55: #{conv2d_ien_forward.1} parent=50 // loop_body
                  _
                $region56: #{conv2d_ien_forward.1} parent=50 // loop_footer
                  %s189 = sadd.s32 1, %s185
                $region57: #{conv2d_ien_forward.1} parent=50 // loop_footer_branch
                  %184 = sbr.rel target = $region53
                $region58: #{conv2d_ien_forward.1} parent=50 // loop_exit
                  _
                loop: start=0, step=1, limit=1
                $region59: #{conv2d_ien_forward.1} parent=50 // loop_pre_header
                  _
                $region60: #{conv2d_ien_forward.1} parent=50 // loop_header
                  %s194 = sphi 0, %s198
                  %p195 = scmp.ge.s32.totalorder %s194, 1
                  %s199 = sphi %s154, %s154
                  %s200 = sphi %s150, %s150
                $region61: #{conv2d_ien_forward.1} parent=50 // loop_header_branch
                  %197 = sbr.rel (%p195) target = $region65
                $region62: #{conv2d_ien_forward.1} parent=50 // loop_body
                  %v201 = vld [vmem:[%s199] sm:$0xf]
                  %202 = vst [vmem:[%s200] sm:$0xf] %v201
                  %v203 = vld [vmem:[%s199 + $0x8] sm:$0xf]
                  %204 = vst [vmem:[%s200 + $0x4] sm:$0xf] %v203
                  %v205 = vld [vmem:[%s199 + $0x10] sm:$0xf]
                  %206 = vst [vmem:[%s200 + $0x8] sm:$0xf] %v205
                  %v207 = vld [vmem:[%s199 + $0x18] sm:$0xf]
                  %208 = vst [vmem:[%s200 + $0xc] sm:$0xf] %v207
                  %v209 = vld [vmem:[%s199 + $0x20] sm:$0xf]
                  %210 = vst [vmem:[%s200 + $0x10] sm:$0xf] %v209
                  %v211 = vld [vmem:[%s199 + $0x28] sm:$0xf]
                  %212 = vst [vmem:[%s200 + $0x14] sm:$0xf] %v211
                $region63: #{conv2d_ien_forward.1} parent=50 // loop_footer
                  %s198 = sadd.s32 1, %s194
                $region64: #{conv2d_ien_forward.1} parent=50 // loop_footer_branch
                  %193 = sbr.rel target = $region60
                $region65: #{conv2d_ien_forward.1} parent=50 // loop_exit
                  _
              $region51: #{conv2d_ien_forward.1} parent=35 // pred_fallthru
                _
            $region36: #{conv2d_ien_forward.1} parent=31 // pred_fallthru
              _
            // Predicated region
            $region37: #{conv2d_ien_forward.1} parent=31 // pred_check
              _
            $region38: #{conv2d_ien_forward.1} parent=31 // pred_check_branch
              %160 = sbr.rel (0) target = $region40
            $region39: #{conv2d_ien_forward.1} parent=31 // pred_region
              loop: start=0, step=1, limit=1
              $region41: #{conv2d_ien_forward.1} parent=39 // loop_pre_header
                _
              $region42: #{conv2d_ien_forward.1} parent=39 // loop_header
                %s163 = sphi 0, %s167
                %p164 = scmp.ge.s32.totalorder %s163, 1
                %s168 = sphi %s154, %s154
                %s169 = sphi %s150, %s150
              $region43: #{conv2d_ien_forward.1} parent=39 // loop_header_branch
                %166 = sbr.rel (%p164) target = $region47
              $region44: #{conv2d_ien_forward.1} parent=39 // loop_body
                %v170 = vld [vmem:[%s168] sm:$0xf]
                %171 = vst [vmem:[%s169] sm:$0xf] %v170
                %v172 = vld [vmem:[%s168 + $0x8] sm:$0xf]
                %173 = vst [vmem:[%s169 + $0x4] sm:$0xf] %v172
                %v174 = vld [vmem:[%s168 + $0x10] sm:$0xf]
                %175 = vst [vmem:[%s169 + $0x8] sm:$0xf] %v174
                %v176 = vld [vmem:[%s168 + $0x18] sm:$0xf]
                %177 = vst [vmem:[%s169 + $0xc] sm:$0xf] %v176
                %v178 = vld [vmem:[%s168 + $0x20] sm:$0xf]
                %179 = vst [vmem:[%s169 + $0x10] sm:$0xf] %v178
                %v180 = vld [vmem:[%s168 + $0x28] sm:$0xf]
                %181 = vst [vmem:[%s169 + $0x14] sm:$0xf] %v180
              $region45: #{conv2d_ien_forward.1} parent=39 // loop_footer
                %s167 = sadd.s32 1, %s163
              $region46: #{conv2d_ien_forward.1} parent=39 // loop_footer_branch
                %162 = sbr.rel target = $region42
              $region47: #{conv2d_ien_forward.1} parent=39 // loop_exit
                _
            $region40: #{conv2d_ien_forward.1} parent=31 // pred_fallthru
              _
          $region32: #{conv2d_ien_forward.1} parent=27 // pred_fallthru
            _
          %213 = vnop
        $region28: #{conv2d_ien_forward.1} parent=23 // pred_fallthru
          _
      $region24: #{conv2d_ien_forward.1} parent=5 // pred_fallthru
        _
      %p214 = scmp.le.s32.totalorder 1, %s9
      %p215 = scmp.lt.s32.totalorder %s9, 5
      %p216 = pnand %p214, %p215
      %p217 = pneg %p216
      // Predicated region
      $region66: #{conv2d_ien_forward.1} parent=5 // pred_check
        _
      $region67: #{conv2d_ien_forward.1} parent=5 // pred_check_branch
        %219 = sbr.rel (%p216) target = $region69
      $region68: #{conv2d_ien_forward.1} parent=5 // pred_region
        %s220 = ssub.s32 %s9, 1
        %s221 = sand.u32 %s36, 1
        %s222 = sand.u32 %s36, 1
        %s223 = smul.addr %s222, 24
        %s224 = scalar_lea.vmem [#allocation2], %s223
        // Predicated region
        $region70: #{conv2d_ien_forward.1} parent=68 // pred_check
          %p225 = pneg %p49
        $region71: #{conv2d_ien_forward.1} parent=68 // pred_check_branch
          %227 = sbr.rel (%p225) target = $region73
        $region72: #{conv2d_ien_forward.1} parent=68 // pred_region
          _
        $region73: #{conv2d_ien_forward.1} parent=68 // pred_fallthru
          _
        %s228 = sand.u32 %s36, 1
        %s229 = sand.u32 %s36, 1
        %s230 = smul.addr %s229, 24
        %s231 = scalar_lea.vmem [#allocation2], %s230
        %p232 = pneg %p49
        %p233 = pneg %p46
        %p234 = pneg %p70
        %p235 = pneg %p67
        %p236 = pneg %p91
        %p237 = pneg %p88
        %p238 = pneg %p119
        %p239 = pneg %p116
        %p240 = scmp.lt.s32.totalorder %s18, 1
        %s241 = scalar_select %p240, %s18, 1
        %p242 = scmp.lt.s32.totalorder %s19, 1
        %s243 = scalar_select %p242, %s19, 1
        %s244 = smul.addr %s241, 2
        %s245 = sadd.s32 %s243, %s244
        %s246 = smul.addr %s245, 8
        %s247 = scalar_lea.vmem %s3, %s246
        %p248 = scmp.lt.s32.totalorder %s18, 1
        %s249 = scalar_select %p248, %s18, 1
        %p250 = scmp.lt.s32.totalorder %s19, 1
        %s251 = scalar_select %p250, %s19, 1
        %s252 = smul.addr %s249, 2
        %s253 = sadd.s32 %s251, %s252
        %s254 = smul.addr %s253, 8
        %s255 = scalar_lea.vmem %s3, %s254
        %v257 = vld [vmem:[%s1] sm:$0xf]
        %v258 = vld [vmem:[%s224] sm:$0xf]
        %v259 = vld [vmem:[%s224 + $0x4] sm:$0xf]
        %v260 = vld [vmem:[%s224 + $0x8] sm:$0xf]
        %v261 = vld [vmem:[%s224 + $0xc] sm:$0xf]
        %v262 = vld [vmem:[%s224 + $0x10] sm:$0xf]
        %v263 = vld [vmem:[%s224 + $0x14] sm:$0xf]
        %v264 = vld [vmem:[%s2] sm:$0xff]
        %266 = vset.pattern.permute.xlu0 0
        %267 = vperm.xlu0 %266, %v264
        %v268 = vpop.permute.xlu0 %267
        %v276 = vunpack.c.l.b16 %v258
        %v277 = vunpack.c.l.b16 %v259
        %v278 = vunpack.c.l.b16 %v260
        %v279 = vunpack.c.l.b16 %v261
        %v280 = vunpack.c.l.b16 %v262
        %v281 = vunpack.c.l.b16 %v263
        %v282 = vpack.c.b16 %v277, %v276
        %v283 = vpack.c.b16 %v279, %v278
        %v284 = vpack.c.b16 %v281, %v280
        %vm288 = vcmask 392192
        %v290 = vsel %vm288, %v257, 0
        %292 = vmatprep.subr.bf16.mxu0 0
        %293 = vmatpush1.bf16.msra.mxu0 %v282
        %294 = vmatprep.subr.bf16.mxu0 0
        %295 = vmatpush1.bf16.msra.mxu0 %v283
        %296 = vmatprep.subr.bf16.mxu0 0
        %297 = vmatpush1.bf16.msra.mxu0 %v284
        %298 = vmatprep.subr.bf16.mxu0 0
        %299 = vmatpush1.bf16.msra.mxu0 0
        %300 = vmatprep.subr.bf16.mxu0 0
        %301 = vmatpush1.bf16.msra.mxu0 0
        %302 = vmatprep.subr.bf16.mxu0 0
        %303 = vmatpush1.bf16.msra.mxu0 0
        %304 = vmatprep.subr.bf16.mxu0 0
        %305 = vmatpush1.bf16.msra.mxu0 0
        %306 = vmatprep.subr.bf16.mxu0 0
        %307 = vmatpush1.bf16.msra.mxu0 0
        %308 = vmatprep.subr.bf16.mxu0 0
        %309 = vmatpush1.bf16.msra.mxu0 0
        %310 = vmatprep.subr.bf16.mxu0 0
        %311 = vmatpush1.bf16.msra.mxu0 0
        %312 = vmatprep.subr.bf16.mxu0 0
        %313 = vmatpush1.bf16.msra.mxu0 0
        %314 = vmatprep.subr.bf16.mxu0 0
        %315 = vmatpush1.bf16.msra.mxu0 0
        %316 = vmatprep.subr.bf16.mxu0 0
        %317 = vmatpush1.bf16.msra.mxu0 0
        %318 = vmatprep.subr.bf16.mxu0 0
        %319 = vmatpush1.bf16.msra.mxu0 0
        %320 = vmatprep.subr.bf16.mxu0 0
        %321 = vmatpush1.bf16.msra.mxu0 0
        %322 = vmatprep.subr.bf16.mxu0 0
        %323 = vmatpush1.bf16.msra.mxu0 0
        %324 = vmatprep.mubr.bf16.mxu0 0
        %325 = vmatmul.mubr.bf16.gmra.mrb[0].mxu0 %v290
        %v326 = vpop.f32.mrb[0].mxu0
        %v327 = vadd.f32 %v268, %v326
        %v328 = vpop.f32.mrb[0].mxu0
        %v329 = vpop.f32.mrb[0].mxu0
        %v330 = vpop.f32.mrb[0].mxu0
        %331 = vdwg.mxu0
        %332 = vst [vmem:[%s255] sm:$0xff] %v327
        %p333 = scmp.lt.s32.totalorder %s18, 1
        %s334 = scalar_select %p333, %s18, 1
        %p335 = scmp.lt.s32.totalorder %s19, 1
        %s336 = scalar_select %p335, %s19, 1
        %s337 = smul.addr %s334, 2
        %s338 = sadd.s32 %s336, %s337
        %s339 = smul.addr %s338, 8
        %s340 = scalar_lea.vmem %s3, %s339
        // Predicated region
        $region74: #{conv2d_ien_forward.1} parent=68 // pred_check
          %p341 = pneg %p116
        $region75: #{conv2d_ien_forward.1} parent=68 // pred_check_branch
          %343 = sbr.rel (%p341) target = $region77
        $region76: #{conv2d_ien_forward.1} parent=68 // pred_region
          _
        $region77: #{conv2d_ien_forward.1} parent=68 // pred_fallthru
          _
      $region69: #{conv2d_ien_forward.1} parent=5 // pred_fallthru
        _
      %p344 = scmp.le.s32.totalorder 2, %s9
      // Predicated region
      $region78: #{conv2d_ien_forward.1} parent=5 // pred_check
        %p345 = pneg %p344
      $region79: #{conv2d_ien_forward.1} parent=5 // pred_check_branch
        %347 = sbr.rel (%p345) target = $region81
      $region80: #{conv2d_ien_forward.1} parent=5 // pred_region
        %s348 = ssub.s32 %s9, 2
        // Predicated region
        $region82: #{conv2d_ien_forward.1} parent=80 // pred_check
          %p349 = pneg %p122
        $region83: #{conv2d_ien_forward.1} parent=80 // pred_check_branch
          %351 = sbr.rel (%p349) target = $region85
        $region84: #{conv2d_ien_forward.1} parent=80 // pred_region
          %p352 = scmp.lt.s32.totalorder %s20, 1
          %s353 = scalar_select %p352, %s20, 1
          %p354 = scmp.lt.s32.totalorder %s21, 1
          %s355 = scalar_select %p354, %s21, 1
          %s356 = smul.addr %s353, 2
          %s357 = sadd.s32 %s355, %s356
          %s358 = smul.addr %s357, 8
          %s359 = scalar_lea.vmem %s3, %s358
        $region85: #{conv2d_ien_forward.1} parent=80 // pred_fallthru
          _
      $region81: #{conv2d_ien_forward.1} parent=5 // pred_fallthru
        _
    $region6: #{conv2d_ien_forward.1} parent=1 // loop_footer
      %s13 = sadd.s32 1, %s9
    $region7: #{conv2d_ien_forward.1} parent=1 // loop_footer_branch
      %8 = sbr.rel target = $region3
    $region8: #{conv2d_ien_forward.1} parent=1 // loop_exit
      _

</llo_original>
